<compile_context>
chip_gen: v7x
topology: tpu7x:2x2x1
jax: 0.10.0
libtpu: 0.0.40
codegen_flags: <defaults>
</compile_context>

<pallas_src>
import jax
import jax.numpy as jnp
from jax.experimental import pallas as pl
from jax.experimental.pallas import tpu as pltpu

IGNORE_INDEX = -100


def _round_up(x, m):
    return (x + m - 1) // m * m


def _mixup_ce_partial_kernel(x_ref, ta_ref, tb_ref, sa_ref, ca_ref, sb_ref, cb_ref):
    # x_ref: (TILE_N, C) logits tile in native dtype; upcast once in-kernel
    # (v5e has no bf16 VPU/EUP path, so do exp/log in f32 on all gens).
    x = x_ref[...].astype(jnp.float32)
    tn, c = x.shape

    # Numerically stable log-sum-exp over the class (lane) axis.
    m = jnp.max(x, axis=-1, keepdims=True)                                 # (tn, 1)
    lse = jnp.log(jnp.sum(jnp.exp(x - m), axis=-1, keepdims=True)) + m     # (tn, 1)

    # One iota reused for both targets.
    cls_iota = jax.lax.broadcasted_iota(jnp.int32, (tn, c), 1)

    def partials(t):
        # t: (tn, 1) int32; padded / ignored rows hold IGNORE_INDEX.
        tgt_logit = jnp.sum(jnp.where(cls_iota == t, x, 0.0),
                            axis=-1, keepdims=True)                        # (tn, 1)
        nll = lse - tgt_logit                                              # (tn, 1)
        mask = (t != IGNORE_INDEX).astype(jnp.float32)                     # (tn, 1)
        s = jnp.sum(nll * mask, axis=0, keepdims=True)                     # (1, 1)
        cnt = jnp.sum(mask, axis=0, keepdims=True)                         # (1, 1)
        return s, cnt

    sa, ca = partials(ta_ref[...])
    sb, cb = partials(tb_ref[...])

    sa_ref[...] = sa.reshape(1, 1, 1)
    ca_ref[...] = ca.reshape(1, 1, 1)
    sb_ref[...] = sb.reshape(1, 1, 1)
    cb_ref[...] = cb.reshape(1, 1, 1)


def mixup_ce_loss(logits, target_a, target_b, beta, *, tile_n=512):
    """logits: (N, C) float (native dtype); target_a/b: (N,) int; beta: scalar."""
    n, c = logits.shape
    itemsize = jnp.dtype(logits.dtype).itemsize

    # Size TILE_N so 2 pipeline buffers of the logits tile fit the default
    # scoped-VMEM limit (32 MiB on all current gens; v7x physical is 64 MiB).
    vmem_budget = 24 * 1024 * 1024
    max_rows = max(8, (vmem_budget // (2 * c * itemsize)) // 8 * 8)
    tile_n = _round_up(max(8, tile_n), 8)
    tile_n = min(tile_n, max_rows, _round_up(n, 8))

    n_pad = _round_up(n, tile_n)
    num_tiles = n_pad // tile_n

    ta = target_a.astype(jnp.int32).reshape(n, 1)
    tb = target_b.astype(jnp.int32).reshape(n, 1)
    x = logits  # native dtype; upcast happens inside the kernel
    if n_pad != n:
        pad = n_pad - n
        x = jnp.pad(x, ((0, pad), (0, 0)))
        ta = jnp.pad(ta, ((0, pad), (0, 0)), constant_values=IGNORE_INDEX)
        tb = jnp.pad(tb, ((0, pad), (0, 0)), constant_values=IGNORE_INDEX)

    out_sds = jax.ShapeDtypeStruct((num_tiles, 1, 1), jnp.float32)
    sa, ca, sb, cb = pl.pallas_call(
        _mixup_ce_partial_kernel,
        grid=(num_tiles,),
        in_specs=[
            pl.BlockSpec((tile_n, c), lambda i: (i, 0)),   # logits tile
            pl.BlockSpec((tile_n, 1), lambda i: (i, 0)),   # target_a tile
            pl.BlockSpec((tile_n, 1), lambda i: (i, 0)),   # target_b tile
        ],
        out_specs=[pl.BlockSpec((1, 1, 1), lambda i: (i, 0, 0))] * 4,
        out_shape=[out_sds] * 4,
        compiler_params=pltpu.CompilerParams(
            dimension_semantics=("parallel",)),
    )(x, ta, tb)

    # Tiny finalize in JAX: accumulate partials across tiles, divide once,
    # then beta-combine.  (All-ignored targets -> 0/0 -> NaN, same as PyTorch.)
    beta = jnp.asarray(beta, jnp.float32)
    loss_a = jnp.sum(sa) / jnp.sum(ca)
    loss_b = jnp.sum(sb) / jnp.sum(cb)
    return beta * loss_a + (1.0 - beta) * loss_b


def _reference(logits, target_a, target_b, beta):
    # Pure-JAX reference of the PyTorch semantics (sanity check).
    logp = jax.nn.log_softmax(logits.astype(jnp.float32), axis=-1)

    def ce(t):
        t = t.astype(jnp.int32)
        keep = t != IGNORE_INDEX
        nll = -jnp.take_along_axis(logp, t[:, None], axis=-1)[:, 0]
        return jnp.sum(jnp.where(keep, nll, 0.0)) / jnp.sum(keep.astype(jnp.float32))

    return beta * ce(target_a) + (1.0 - beta) * ce(target_b)


if __name__ == "__main__":
    key = jax.random.PRNGKey(0)
    k1, k2, k3 = jax.random.split(key, 3)

    # Small classification head: batch=12, classes=128.  tile_n=8 forces the
    # grid to have 2 tiles and exercises the N-padding path (12 -> 16 rows).
    N, C = 12, 128
    logits = jax.random.normal(k1, (N, C), dtype=jnp.float32)
    target_a = jax.random.randint(k2, (N,), 0, C, dtype=jnp.int32)
    target_b = jax.random.randint(k3, (N,), 0, C, dtype=jnp.int32)
    # Exercise ignore_index masking.
    target_a = target_a.at[3].set(IGNORE_INDEX)
    beta = 0.3

    out = mixup_ce_loss(logits, target_a, target_b, beta, tile_n=8)
    out = jax.block_until_ready(out)

    ref = _reference(logits, target_a, target_b, beta)
    assert jnp.allclose(out, ref, rtol=1e-5, atol=1e-5), (out, ref)

    print("KERNEL_OK")
</pallas_src>

<mosaic_0001>
module attributes {stable_mosaic.version = 11 : i64} {
  func.func @_mixup_ce_partial_kernel(%arg0: i32, %arg1: memref<8x128xf32, #tpu.memory_space<vmem>>, %arg2: memref<8x1xi32, #tpu.memory_space<vmem>>, %arg3: memref<8x1xi32, #tpu.memory_space<vmem>>, %arg4: memref<1x1x1xf32, #tpu.memory_space<vmem>>, %arg5: memref<1x1x1xf32, #tpu.memory_space<vmem>>, %arg6: memref<1x1x1xf32, #tpu.memory_space<vmem>>, %arg7: memref<1x1x1xf32, #tpu.memory_space<vmem>>) attributes {dimension_semantics = [#tpu.dimension_semantics<parallel>], iteration_bounds = array<i64: 2>, scalar_prefetch = 0 : i64, scratch_operands = 0 : i64, tpu.core_type = #tpu.core_type<tc>, window_params = [{transform_indices = @transform_0, window_bounds = array<i64: 8, 128>}, {transform_indices = @transform_1, window_bounds = array<i64: 8, 1>}, {transform_indices = @transform_2, window_bounds = array<i64: 8, 1>}, {transform_indices = @transform_3, window_bounds = array<i64: 1, 1, 1>}, {transform_indices = @transform_4, window_bounds = array<i64: 1, 1, 1>}, {transform_indices = @transform_5, window_bounds = array<i64: 1, 1, 1>}, {transform_indices = @transform_6, window_bounds = array<i64: 1, 1, 1>}]} {
    %c0 = arith.constant 0 : index
    %c0_0 = arith.constant 0 : index
    %0 = vector.load %arg1[%c0, %c0_0] : memref<8x128xf32, #tpu.memory_space<vmem>>, vector<8x128xf32>
    %cst = arith.constant dense<0xFF800000> : vector<8xf32>
    %1 = vector.multi_reduction <maximumf>, %0, %cst [1] : vector<8x128xf32> to vector<8xf32>
    %2 = vector.shape_cast %1 : vector<8xf32> to vector<8x1xf32>
    %3 = vector.broadcast %2 : vector<8x1xf32> to vector<8x128xf32>
    %4 = arith.subf %0, %3 : vector<8x128xf32>
    %5 = math.exp %4 : vector<8x128xf32>
    %cst_1 = arith.constant dense<0.000000e+00> : vector<8xf32>
    %6 = vector.multi_reduction <add>, %5, %cst_1 [1] : vector<8x128xf32> to vector<8xf32>
    %7 = vector.shape_cast %6 : vector<8xf32> to vector<8x1xf32>
    %8 = math.log %7 : vector<8x1xf32>
    %9 = arith.addf %8, %2 : vector<8x1xf32>
    %10 = tpu.iota {dimensions = array<i32: 1>} : vector<8x128xi32>
    %c0_2 = arith.constant 0 : index
    %c0_3 = arith.constant 0 : index
    %11 = vector.load %arg2[%c0_2, %c0_3] : memref<8x1xi32, #tpu.memory_space<vmem>>, vector<8x1xi32>
    %12 = vector.broadcast %11 : vector<8x1xi32> to vector<8x128xi32>
    %13 = arith.cmpi eq, %10, %12 : vector<8x128xi32>
    %cst_4 = arith.constant 0.000000e+00 : f32
    %14 = vector.broadcast %cst_4 : f32 to vector<8x128xf32>
    %15 = arith.select %13, %0, %14 : vector<8x128xi1>, vector<8x128xf32>
    %cst_5 = arith.constant dense<0.000000e+00> : vector<8xf32>
    %16 = vector.multi_reduction <add>, %15, %cst_5 [1] : vector<8x128xf32> to vector<8xf32>
    %17 = vector.shape_cast %16 : vector<8xf32> to vector<8x1xf32>
    %18 = arith.subf %9, %17 : vector<8x1xf32>
    %c-100_i32 = arith.constant -100 : i32
    %19 = vector.broadcast %c-100_i32 : i32 to vector<8x1xi32>
    %20 = arith.cmpi ne, %11, %19 : vector<8x1xi32>
    %21 = arith.extui %20 : vector<8x1xi1> to vector<8x1xi32>
    %22 = arith.sitofp %21 : vector<8x1xi32> to vector<8x1xf32>
    %23 = arith.mulf %18, %22 : vector<8x1xf32>
    %cst_6 = arith.constant dense<0.000000e+00> : vector<1xf32>
    %24 = vector.multi_reduction <add>, %23, %cst_6 [0] : vector<8x1xf32> to vector<1xf32>
    %25 = vector.shape_cast %24 : vector<1xf32> to vector<1x1xf32>
    %cst_7 = arith.constant dense<0.000000e+00> : vector<1xf32>
    %26 = vector.multi_reduction <add>, %22, %cst_7 [0] : vector<8x1xf32> to vector<1xf32>
    %27 = vector.shape_cast %26 : vector<1xf32> to vector<1x1xf32>
    %c0_8 = arith.constant 0 : index
    %c0_9 = arith.constant 0 : index
    %28 = vector.load %arg3[%c0_8, %c0_9] : memref<8x1xi32, #tpu.memory_space<vmem>>, vector<8x1xi32>
    %29 = vector.broadcast %28 : vector<8x1xi32> to vector<8x128xi32>
    %30 = arith.cmpi eq, %10, %29 : vector<8x128xi32>
    %cst_10 = arith.constant 0.000000e+00 : f32
    %31 = vector.broadcast %cst_10 : f32 to vector<8x128xf32>
    %32 = arith.select %30, %0, %31 : vector<8x128xi1>, vector<8x128xf32>
    %cst_11 = arith.constant dense<0.000000e+00> : vector<8xf32>
    %33 = vector.multi_reduction <add>, %32, %cst_11 [1] : vector<8x128xf32> to vector<8xf32>
    %34 = vector.shape_cast %33 : vector<8xf32> to vector<8x1xf32>
    %35 = arith.subf %9, %34 : vector<8x1xf32>
    %c-100_i32_12 = arith.constant -100 : i32
    %36 = vector.broadcast %c-100_i32_12 : i32 to vector<8x1xi32>
    %37 = arith.cmpi ne, %28, %36 : vector<8x1xi32>
    %38 = arith.extui %37 : vector<8x1xi1> to vector<8x1xi32>
    %39 = arith.sitofp %38 : vector<8x1xi32> to vector<8x1xf32>
    %40 = arith.mulf %35, %39 : vector<8x1xf32>
    %cst_13 = arith.constant dense<0.000000e+00> : vector<1xf32>
    %41 = vector.multi_reduction <add>, %40, %cst_13 [0] : vector<8x1xf32> to vector<1xf32>
    %42 = vector.shape_cast %41 : vector<1xf32> to vector<1x1xf32>
    %cst_14 = arith.constant dense<0.000000e+00> : vector<1xf32>
    %43 = vector.multi_reduction <add>, %39, %cst_14 [0] : vector<8x1xf32> to vector<1xf32>
    %44 = vector.shape_cast %43 : vector<1xf32> to vector<1x1xf32>
    %45 = vector.shape_cast %25 : vector<1x1xf32> to vector<1x1x1xf32>
    %c0_15 = arith.constant 0 : index
    %c0_16 = arith.constant 0 : index
    %c0_17 = arith.constant 0 : index
    %46 = vector.load %arg4[%c0_15, %c0_16, %c0_17] : memref<1x1x1xf32, #tpu.memory_space<vmem>>, vector<1x1x1xf32>
    tpu.vector_store %arg4[%c0_15, %c0_16, %c0_17], %45 {strides = array<i32>} : memref<1x1x1xf32, #tpu.memory_space<vmem>>, vector<1x1x1xf32>,
    %47 = vector.shape_cast %27 : vector<1x1xf32> to vector<1x1x1xf32>
    %c0_18 = arith.constant 0 : index
    %c0_19 = arith.constant 0 : index
    %c0_20 = arith.constant 0 : index
    %48 = vector.load %arg5[%c0_18, %c0_19, %c0_20] : memref<1x1x1xf32, #tpu.memory_space<vmem>>, vector<1x1x1xf32>
    tpu.vector_store %arg5[%c0_18, %c0_19, %c0_20], %47 {strides = array<i32>} : memref<1x1x1xf32, #tpu.memory_space<vmem>>, vector<1x1x1xf32>,
    %49 = vector.shape_cast %42 : vector<1x1xf32> to vector<1x1x1xf32>
    %c0_21 = arith.constant 0 : index
    %c0_22 = arith.constant 0 : index
    %c0_23 = arith.constant 0 : index
    %50 = vector.load %arg6[%c0_21, %c0_22, %c0_23] : memref<1x1x1xf32, #tpu.memory_space<vmem>>, vector<1x1x1xf32>
    tpu.vector_store %arg6[%c0_21, %c0_22, %c0_23], %49 {strides = array<i32>} : memref<1x1x1xf32, #tpu.memory_space<vmem>>, vector<1x1x1xf32>,
    %51 = vector.shape_cast %44 : vector<1x1xf32> to vector<1x1x1xf32>
    %c0_24 = arith.constant 0 : index
    %c0_25 = arith.constant 0 : index
    %c0_26 = arith.constant 0 : index
    %52 = vector.load %arg7[%c0_24, %c0_25, %c0_26] : memref<1x1x1xf32, #tpu.memory_space<vmem>>, vector<1x1x1xf32>
    tpu.vector_store %arg7[%c0_24, %c0_25, %c0_26], %51 {strides = array<i32>} : memref<1x1x1xf32, #tpu.memory_space<vmem>>, vector<1x1x1xf32>,
    return
  }
  func.func @transform_0(%arg0: i32) -> (i32, i32) {
    %c0_i32 = arith.constant 0 : i32
    %c0_i32_0 = arith.constant 0 : i32
    return %arg0, %c0_i32 : i32, i32
  }
  func.func @transform_1(%arg0: i32) -> (i32, i32) {
    %c0_i32 = arith.constant 0 : i32
    %c0_i32_0 = arith.constant 0 : i32
    return %arg0, %c0_i32 : i32, i32
  }
  func.func @transform_2(%arg0: i32) -> (i32, i32) {
    %c0_i32 = arith.constant 0 : i32
    %c0_i32_0 = arith.constant 0 : i32
    return %arg0, %c0_i32 : i32, i32
  }
  func.func @transform_3(%arg0: i32) -> (i32, i32, i32) {
    %c0_i32 = arith.constant 0 : i32
    %c0_i32_0 = arith.constant 0 : i32
    %c0_i32_1 = arith.constant 0 : i32
    return %arg0, %c0_i32, %c0_i32_0 : i32, i32, i32
  }
  func.func @transform_4(%arg0: i32) -> (i32, i32, i32) {
    %c0_i32 = arith.constant 0 : i32
    %c0_i32_0 = arith.constant 0 : i32
    %c0_i32_1 = arith.constant 0 : i32
    return %arg0, %c0_i32, %c0_i32_0 : i32, i32, i32
  }
  func.func @transform_5(%arg0: i32) -> (i32, i32, i32) {
    %c0_i32 = arith.constant 0 : i32
    %c0_i32_0 = arith.constant 0 : i32
    %c0_i32_1 = arith.constant 0 : i32
    return %arg0, %c0_i32, %c0_i32_0 : i32, i32, i32
  }
  func.func @transform_6(%arg0: i32) -> (i32, i32, i32) {
    %c0_i32 = arith.constant 0 : i32
    %c0_i32_0 = arith.constant 0 : i32
    %c0_i32_1 = arith.constant 0 : i32
    return %arg0, %c0_i32, %c0_i32_0 : i32, i32, i32
  }
}

</mosaic_0001>

<llo_original>
// kernel: tpu_custom_call.1
$region0: #{tpu_custom_call.1}
  #allocation0 [shape = 'u32[]', space=smem, size = 0x4, offset = 0x4, fixed_abs, tag = 'smem constant byte address 0x4 - core index']
  #allocation1 [shape = 'u32[144,128]{1,0:T(1,128)}', space=vmem, size = 0x12000, scoped, tag = 'internal scratch']
  %s0 = inlined_call_operand.vmem [shape: f32[16,128], index: 0, kind: input, shape index: {}]
  %s1 = inlined_call_operand.vmem [shape: s32[16,1], index: 1, kind: input, shape index: {}]
  %s2 = inlined_call_operand.vmem [shape: s32[16,1], index: 2, kind: input, shape index: {}]
  %s3 = inlined_call_operand.vmem [shape: f32[2,1,1], index: 3, kind: output, shape index: {0}]
  %s4 = inlined_call_operand.vmem [shape: f32[2,1,1], index: 4, kind: output, shape index: {1}]
  %s5 = inlined_call_operand.vmem [shape: f32[2,1,1], index: 5, kind: output, shape index: {2}]
  %s6 = inlined_call_operand.vmem [shape: f32[2,1,1], index: 6, kind: output, shape index: {3}]
  %7 = xla_tuple %s3, %s4, %s5, %s6
  %s8 = sld [smem:[#allocation0]]
  $region69: #{tpu_custom_call.1} parent=0
    _
  %s10 = ssub.s32 1, %s8
  %s11 = scalar_select 0, %s10, %s8
  loop: start=0, step=1, limit=4
  $region2: #{tpu_custom_call.1} parent=0 // loop_pre_header
    _
  $region3: #{tpu_custom_call.1} parent=0 // loop_header
    %s13 = sphi 0, %s17
    %p14 = scmp.ge.s32.totalorder %s13, 4
    %s23 = sphi 0, %s25
    %s26 = sphi 0, %s23
    %s27 = sphi 0, %s26
    %s43 = sphi 0, %s27
    %s49 = sphi 0, %s51
    %s52 = sphi 0, %s49
    %s53 = sphi 0, %s52
    %s69 = sphi 0, %s53
    %s75 = sphi 0, %s77
    %s78 = sphi 0, %s75
    %s79 = sphi 0, %s78
    %s95 = sphi 0, %s79
    %s101 = sphi 0, %s103
    %s104 = sphi 0, %s101
    %s105 = sphi 0, %s104
    %s121 = sphi 0, %s105
    %s127 = sphi 0, %s129
    %s130 = sphi 0, %s127
    %s131 = sphi 0, %s130
    %s147 = sphi 0, %s131
    %s153 = sphi 0, %s155
    %s156 = sphi 0, %s153
    %s157 = sphi 0, %s156
    %s173 = sphi 0, %s157
    %s179 = sphi 0, %s181
    %s182 = sphi 0, %s179
    %s183 = sphi 0, %s182
    %s199 = sphi 0, %s183
  $region4: #{tpu_custom_call.1} parent=0 // loop_header_branch
    %16 = sbr.rel (%p14) target = $region8
  $region5: #{tpu_custom_call.1} parent=0 // loop_body
    %s18 = ssub.s32 %s13, 1
    %s19 = ssub.s32 %s13, 2
    %s20 = sadd.s32 %s13, 1
    %s21 = ssub.s32 %s13, %s20
    %p22 = scmp.eq.s32.totalorder %s21, 0
    %s24 = sadd.s32 %s23, 1
    %s25 = scalar_select %p22, %s23, %s24
    %p28 = pneg %p22
    %p29 = scmp.eq.s32.totalorder %s13, 1
    %p30 = por %p28, %p29
    %p31 = scmp.ne.s32.totalorder %s23, %s26
    %p32 = scmp.eq.s32.totalorder %s13, 0
    %p33 = por %p31, %p32
    %p34 = scmp.ne.s32.totalorder %s23, %s26
    %p35 = scmp.eq.s32.totalorder %s18, 1
    %p36 = por %p34, %p35
    %p37 = scmp.ne.s32.totalorder %s26, %s27
    %p38 = scmp.eq.s32.totalorder %s18, 0
    %p39 = por %p37, %p38
    %p40 = scmp.ne.s32.totalorder %s26, %s27
    %p41 = scmp.eq.s32.totalorder %s19, 1
    %p42 = por %p40, %p41
    %p44 = scmp.ne.s32.totalorder %s27, %s43
    %p45 = scmp.eq.s32.totalorder %s19, 0
    %p46 = por %p44, %p45
    %s47 = ssub.s32 %s13, %s20
    %p48 = scmp.eq.s32.totalorder %s47, 0
    %s50 = sadd.s32 %s49, 1
    %s51 = scalar_select %p48, %s49, %s50
    %p54 = pneg %p48
    %p55 = scmp.eq.s32.totalorder %s13, 1
    %p56 = por %p54, %p55
    %p57 = scmp.ne.s32.totalorder %s49, %s52
    %p58 = scmp.eq.s32.totalorder %s13, 0
    %p59 = por %p57, %p58
    %p60 = scmp.ne.s32.totalorder %s49, %s52
    %p61 = scmp.eq.s32.totalorder %s18, 1
    %p62 = por %p60, %p61
    %p63 = scmp.ne.s32.totalorder %s52, %s53
    %p64 = scmp.eq.s32.totalorder %s18, 0
    %p65 = por %p63, %p64
    %p66 = scmp.ne.s32.totalorder %s52, %s53
    %p67 = scmp.eq.s32.totalorder %s19, 1
    %p68 = por %p66, %p67
    %p70 = scmp.ne.s32.totalorder %s53, %s69
    %p71 = scmp.eq.s32.totalorder %s19, 0
    %p72 = por %p70, %p71
    %s73 = ssub.s32 %s13, %s20
    %p74 = scmp.eq.s32.totalorder %s73, 0
    %s76 = sadd.s32 %s75, 1
    %s77 = scalar_select %p74, %s75, %s76
    %p80 = pneg %p74
    %p81 = scmp.eq.s32.totalorder %s13, 1
    %p82 = por %p80, %p81
    %p83 = scmp.ne.s32.totalorder %s75, %s78
    %p84 = scmp.eq.s32.totalorder %s13, 0
    %p85 = por %p83, %p84
    %p86 = scmp.ne.s32.totalorder %s75, %s78
    %p87 = scmp.eq.s32.totalorder %s18, 1
    %p88 = por %p86, %p87
    %p89 = scmp.ne.s32.totalorder %s78, %s79
    %p90 = scmp.eq.s32.totalorder %s18, 0
    %p91 = por %p89, %p90
    %p92 = scmp.ne.s32.totalorder %s78, %s79
    %p93 = scmp.eq.s32.totalorder %s19, 1
    %p94 = por %p92, %p93
    %p96 = scmp.ne.s32.totalorder %s79, %s95
    %p97 = scmp.eq.s32.totalorder %s19, 0
    %p98 = por %p96, %p97
    %s99 = ssub.s32 %s13, %s20
    %p100 = scmp.eq.s32.totalorder %s99, 0
    %s102 = sadd.s32 %s101, 1
    %s103 = scalar_select %p100, %s101, %s102
    %p106 = pneg %p100
    %p107 = scmp.eq.s32.totalorder %s13, 1
    %p108 = por %p106, %p107
    %p109 = scmp.ne.s32.totalorder %s101, %s104
    %p110 = scmp.eq.s32.totalorder %s13, 0
    %p111 = por %p109, %p110
    %p112 = scmp.ne.s32.totalorder %s101, %s104
    %p113 = scmp.eq.s32.totalorder %s18, 1
    %p114 = por %p112, %p113
    %p115 = scmp.ne.s32.totalorder %s104, %s105
    %p116 = scmp.eq.s32.totalorder %s18, 0
    %p117 = por %p115, %p116
    %p118 = scmp.ne.s32.totalorder %s104, %s105
    %p119 = scmp.eq.s32.totalorder %s19, 1
    %p120 = por %p118, %p119
    %p122 = scmp.ne.s32.totalorder %s105, %s121
    %p123 = scmp.eq.s32.totalorder %s19, 0
    %p124 = por %p122, %p123
    %s125 = ssub.s32 %s13, %s20
    %p126 = scmp.eq.s32.totalorder %s125, 0
    %s128 = sadd.s32 %s127, 1
    %s129 = scalar_select %p126, %s127, %s128
    %p132 = pneg %p126
    %p133 = scmp.eq.s32.totalorder %s13, 1
    %p134 = por %p132, %p133
    %p135 = scmp.ne.s32.totalorder %s127, %s130
    %p136 = scmp.eq.s32.totalorder %s13, 0
    %p137 = por %p135, %p136
    %p138 = scmp.ne.s32.totalorder %s127, %s130
    %p139 = scmp.eq.s32.totalorder %s18, 1
    %p140 = por %p138, %p139
    %p141 = scmp.ne.s32.totalorder %s130, %s131
    %p142 = scmp.eq.s32.totalorder %s18, 0
    %p143 = por %p141, %p142
    %p144 = scmp.ne.s32.totalorder %s130, %s131
    %p145 = scmp.eq.s32.totalorder %s19, 1
    %p146 = por %p144, %p145
    %p148 = scmp.ne.s32.totalorder %s131, %s147
    %p149 = scmp.eq.s32.totalorder %s19, 0
    %p150 = por %p148, %p149
    %s151 = ssub.s32 %s13, %s20
    %p152 = scmp.eq.s32.totalorder %s151, 0
    %s154 = sadd.s32 %s153, 1
    %s155 = scalar_select %p152, %s153, %s154
    %p158 = pneg %p152
    %p159 = scmp.eq.s32.totalorder %s13, 1
    %p160 = por %p158, %p159
    %p161 = scmp.ne.s32.totalorder %s153, %s156
    %p162 = scmp.eq.s32.totalorder %s13, 0
    %p163 = por %p161, %p162
    %p164 = scmp.ne.s32.totalorder %s153, %s156
    %p165 = scmp.eq.s32.totalorder %s18, 1
    %p166 = por %p164, %p165
    %p167 = scmp.ne.s32.totalorder %s156, %s157
    %p168 = scmp.eq.s32.totalorder %s18, 0
    %p169 = por %p167, %p168
    %p170 = scmp.ne.s32.totalorder %s156, %s157
    %p171 = scmp.eq.s32.totalorder %s19, 1
    %p172 = por %p170, %p171
    %p174 = scmp.ne.s32.totalorder %s157, %s173
    %p175 = scmp.eq.s32.totalorder %s19, 0
    %p176 = por %p174, %p175
    %s177 = ssub.s32 %s13, %s20
    %p178 = scmp.eq.s32.totalorder %s177, 0
    %s180 = sadd.s32 %s179, 1
    %s181 = scalar_select %p178, %s179, %s180
    %p184 = pneg %p178
    %p185 = scmp.eq.s32.totalorder %s13, 1
    %p186 = por %p184, %p185
    %p187 = scmp.ne.s32.totalorder %s179, %s182
    %p188 = scmp.eq.s32.totalorder %s13, 0
    %p189 = por %p187, %p188
    %p190 = scmp.ne.s32.totalorder %s179, %s182
    %p191 = scmp.eq.s32.totalorder %s18, 1
    %p192 = por %p190, %p191
    %p193 = scmp.ne.s32.totalorder %s182, %s183
    %p194 = scmp.eq.s32.totalorder %s18, 0
    %p195 = por %p193, %p194
    %p196 = scmp.ne.s32.totalorder %s182, %s183
    %p197 = scmp.eq.s32.totalorder %s19, 1
    %p198 = por %p196, %p197
    %p200 = scmp.ne.s32.totalorder %s183, %s199
    %p201 = scmp.eq.s32.totalorder %s19, 0
    %p202 = por %p200, %p201
    %p203 = scmp.le.s32.totalorder 1, %s13
    %p204 = scmp.lt.s32.totalorder %s13, 3
    %p205 = pnand %p203, %p204
    %p206 = pneg %p205
    // Predicated region
    $region9: #{tpu_custom_call.1} parent=5 // pred_check
      _
    $region10: #{tpu_custom_call.1} parent=5 // pred_check_branch
      %208 = sbr.rel (%p205) target = $region12
    $region11: #{tpu_custom_call.1} parent=5 // pred_region
      %s209 = ssub.s32 %s13, 1
    $region12: #{tpu_custom_call.1} parent=5 // pred_fallthru
      _
    %p210 = scmp.lt.s32.totalorder %s13, 2
    // Predicated region
    $region13: #{tpu_custom_call.1} parent=5 // pred_check
      %p211 = pneg %p210
    $region14: #{tpu_custom_call.1} parent=5 // pred_check_branch
      %213 = sbr.rel (%p211) target = $region16
    $region15: #{tpu_custom_call.1} parent=5 // pred_region
      // Predicated region
      $region17: #{tpu_custom_call.1} parent=15 // pred_check
        %p214 = pneg %p33
      $region18: #{tpu_custom_call.1} parent=15 // pred_check_branch
        %216 = sbr.rel (%p214) target = $region20
      $region19: #{tpu_custom_call.1} parent=15 // pred_region
        %p217 = scmp.lt.s32.totalorder %s13, 1
        %s218 = scalar_select %p217, %s13, 1
        %s219 = smul.addr %s218, 8
        %s220 = scalar_lea.vmem %s0, %s219
      $region20: #{tpu_custom_call.1} parent=15 // pred_fallthru
        _
      // Predicated region
      $region21: #{tpu_custom_call.1} parent=15 // pred_check
        %p221 = pneg %p59
      $region22: #{tpu_custom_call.1} parent=15 // pred_check_branch
        %223 = sbr.rel (%p221) target = $region24
      $region23: #{tpu_custom_call.1} parent=15 // pred_region
        %p224 = scmp.lt.s32.totalorder %s13, 1
        %s225 = scalar_select %p224, %s13, 1
        %s226 = smul.addr %s225, 8
        %s227 = scalar_lea.vmem %s1, %s226
      $region24: #{tpu_custom_call.1} parent=15 // pred_fallthru
        _
      // Predicated region
      $region25: #{tpu_custom_call.1} parent=15 // pred_check
        %p228 = pneg %p85
      $region26: #{tpu_custom_call.1} parent=15 // pred_check_branch
        %230 = sbr.rel (%p228) target = $region28
      $region27: #{tpu_custom_call.1} parent=15 // pred_region
        %p231 = scmp.lt.s32.totalorder %s13, 1
        %s232 = scalar_select %p231, %s13, 1
        %s233 = smul.addr %s232, 8
        %s234 = scalar_lea.vmem %s2, %s233
      $region28: #{tpu_custom_call.1} parent=15 // pred_fallthru
        _
    $region16: #{tpu_custom_call.1} parent=5 // pred_fallthru
      _
    %p235 = scmp.le.s32.totalorder 1, %s13
    %p236 = scmp.lt.s32.totalorder %s13, 3
    %p237 = pnand %p235, %p236
    %p238 = pneg %p237
    // Predicated region
    $region29: #{tpu_custom_call.1} parent=5 // pred_check
      _
    $region30: #{tpu_custom_call.1} parent=5 // pred_check_branch
      %240 = sbr.rel (%p237) target = $region32
    $region31: #{tpu_custom_call.1} parent=5 // pred_region
      %s241 = ssub.s32 %s13, 1
      %p242 = scmp.lt.s32.totalorder %s18, 1
      %s243 = scalar_select %p242, %s18, 1
      %s244 = smul.addr %s243, 8
      %s245 = scalar_lea.vmem %s0, %s244
      %p246 = pneg %p39
      %p247 = pneg %p36
      %p248 = scmp.lt.s32.totalorder %s18, 1
      %s249 = scalar_select %p248, %s18, 1
      %s250 = smul.addr %s249, 8
      %s251 = scalar_lea.vmem %s1, %s250
      %p252 = pneg %p65
      %p253 = pneg %p62
      %p254 = scmp.lt.s32.totalorder %s18, 1
      %s255 = scalar_select %p254, %s18, 1
      %s256 = smul.addr %s255, 8
      %s257 = scalar_lea.vmem %s2, %s256
      %p258 = pneg %p91
      %p259 = pneg %p88
      %p260 = pneg %p117
      %p261 = pneg %p114
      %p262 = scmp.lt.s32.totalorder %s18, 1
      %s263 = scalar_select %p262, %s18, 1
      %s264 = scalar_lea.vmem %s3, %s263
      %p265 = pneg %p143
      %p266 = pneg %p140
      %p267 = scmp.lt.s32.totalorder %s18, 1
      %s268 = scalar_select %p267, %s18, 1
      %s269 = scalar_lea.vmem %s4, %s268
      %p270 = pneg %p169
      %p271 = pneg %p166
      %p272 = scmp.lt.s32.totalorder %s18, 1
      %s273 = scalar_select %p272, %s18, 1
      %s274 = scalar_lea.vmem %s5, %s273
      %p275 = pneg %p195
      %p276 = pneg %p192
      %p277 = scmp.lt.s32.totalorder %s18, 1
      %s278 = scalar_select %p277, %s18, 1
      %s279 = scalar_lea.vmem %s6, %s278
      %p280 = scmp.lt.s32.totalorder %s18, 1
      %s281 = scalar_select %p280, %s18, 1
      %s282 = smul.addr %s281, 8
      %s283 = scalar_lea.vmem %s0, %s282
      %p284 = scmp.lt.s32.totalorder %s18, 1
      %s285 = scalar_select %p284, %s18, 1
      %s286 = smul.addr %s285, 8
      %s287 = scalar_lea.vmem %s1, %s286
      %p288 = scmp.lt.s32.totalorder %s18, 1
      %s289 = scalar_select %p288, %s18, 1
      %s290 = smul.addr %s289, 8
      %s291 = scalar_lea.vmem %s2, %s290
      %p292 = scmp.lt.s32.totalorder %s18, 1
      %s293 = scalar_select %p292, %s18, 1
      %s294 = scalar_lea.vmem %s3, %s293
      %p295 = scmp.lt.s32.totalorder %s18, 1
      %s296 = scalar_select %p295, %s18, 1
      %s297 = scalar_lea.vmem %s4, %s296
      %p298 = scmp.lt.s32.totalorder %s18, 1
      %s299 = scalar_select %p298, %s18, 1
      %s300 = scalar_lea.vmem %s5, %s299
      %p301 = scmp.lt.s32.totalorder %s18, 1
      %s302 = scalar_select %p301, %s18, 1
      %s303 = scalar_lea.vmem %s6, %s302
      %v304 = vld [vmem:[%s283] sm:$0xff]
      %305 = vmax.xlane.f32.xlu0 %v304
      %v306 = vpop.xlane.xlu0 %305
      %v307 = vsub.f32 %v304, %v306
      %v308 = vmul.f32 %v307, 1.442695
      %v309 = vpow.pop %v308
      %310 = vadd.xlane.f32.xlu0 %v309
      %v311 = vpop.xlane.xlu0 %310
      %v312 = vlog2.pop %v311
      %v313 = vmul.f32 %v312, 0.6931472
      %v314 = vadd.f32 %v313, %v306
      %v315 = vlaneseq
      %v316 = vand.u32 %v315, 127
      %v317 = vld [vmem:[%s287] sm:$0xff]
      %318 = vset.pattern.permute.xlu0 0
      %319 = vperm.xlu0 %318, %v317
      %v320 = vpop.permute.xlu0 %319
      %vm321 = vcmp.eq.s32.totalorder %v316, %v320
      %v322 = vsel %vm321, %v304, 0.0
      %323 = vadd.xlane.f32.xlu0 %v322
      %v324 = vpop.xlane.xlu0 %323
      %v325 = vsub.f32 %v314, %v324
      %vm326 = vcmp.ne.s32.totalorder %v317, 4294967196
      %v327 = vsel %vm326, 1, 0
      %v328 = vcvt.s32.f32 %v327
      %v329 = vmul.f32 %v325, %v328
      %vm330 = vcmask 7168
      %v331 = vsel %vm330, %v329, 0.0
      %v332 = vrot.slane %v331, 4
      %v333 = vadd.f32 %v331, %v332
      %v334 = vrot.slane %v333, 2
      %v335 = vadd.f32 %v333, %v334
      %v336 = vrot.slane %v335, 1
      %v337 = vadd.f32 %v335, %v336
      %v338 = vsel %vm330, %v328, 0.0
      %v339 = vrot.slane %v338, 4
      %v340 = vadd.f32 %v338, %v339
      %v341 = vrot.slane %v340, 2
      %v342 = vadd.f32 %v340, %v341
      %v343 = vrot.slane %v342, 1
      %v344 = vadd.f32 %v342, %v343
      %v345 = vld [vmem:[%s291] sm:$0xff]
      %346 = vset.pattern.permute.xlu0 0
      %347 = vperm.xlu0 %346, %v345
      %v348 = vpop.permute.xlu0 %347
      %vm349 = vcmp.eq.s32.totalorder %v316, %v348
      %v350 = vsel %vm349, %v304, 0.0
      %351 = vadd.xlane.f32.xlu0 %v350
      %v352 = vpop.xlane.xlu0 %351
      %v353 = vsub.f32 %v314, %v352
      %vm354 = vcmp.ne.s32.totalorder %v345, 4294967196
      %v355 = vsel %vm354, 1, 0
      %v356 = vcvt.s32.f32 %v355
      %v357 = vmul.f32 %v353, %v356
      %v358 = vsel %vm330, %v357, 0.0
      %v359 = vrot.slane %v358, 4
      %v360 = vadd.f32 %v358, %v359
      %v361 = vrot.slane %v360, 2
      %v362 = vadd.f32 %v360, %v361
      %v363 = vrot.slane %v362, 1
      %v364 = vadd.f32 %v362, %v363
      %v365 = vsel %vm330, %v356, 0.0
      %v366 = vrot.slane %v365, 4
      %v367 = vadd.f32 %v365, %v366
      %v368 = vrot.slane %v367, 2
      %v369 = vadd.f32 %v367, %v368
      %v370 = vrot.slane %v369, 1
      %v371 = vadd.f32 %v369, %v370
      %vm372 = vcmask 0
      %373 = vst.msk [vmem:[%s294] sm:$0x1] %vm372, %v337
      %374 = vst.msk [vmem:[%s297] sm:$0x1] %vm372, %v344
      %375 = vst.msk [vmem:[%s300] sm:$0x1] %vm372, %v364
      %376 = vst.msk [vmem:[%s303] sm:$0x1] %vm372, %v371
      %p377 = scmp.lt.s32.totalorder %s18, 1
      %s378 = scalar_select %p377, %s18, 1
      %s379 = scalar_lea.vmem %s3, %s378
      %p380 = scmp.lt.s32.totalorder %s18, 1
      %s381 = scalar_select %p380, %s18, 1
      %s382 = scalar_lea.vmem %s4, %s381
      %p383 = scmp.lt.s32.totalorder %s18, 1
      %s384 = scalar_select %p383, %s18, 1
      %s385 = scalar_lea.vmem %s5, %s384
      %p386 = scmp.lt.s32.totalorder %s18, 1
      %s387 = scalar_select %p386, %s18, 1
      %s388 = scalar_lea.vmem %s6, %s387
      // Predicated region
      $region33: #{tpu_custom_call.1} parent=31 // pred_check
        %p389 = pneg %p114
      $region34: #{tpu_custom_call.1} parent=31 // pred_check_branch
        %391 = sbr.rel (%p389) target = $region36
      $region35: #{tpu_custom_call.1} parent=31 // pred_region
        _
      $region36: #{tpu_custom_call.1} parent=31 // pred_fallthru
        _
      // Predicated region
      $region37: #{tpu_custom_call.1} parent=31 // pred_check
        %p392 = pneg %p140
      $region38: #{tpu_custom_call.1} parent=31 // pred_check_branch
        %394 = sbr.rel (%p392) target = $region40
      $region39: #{tpu_custom_call.1} parent=31 // pred_region
        _
      $region40: #{tpu_custom_call.1} parent=31 // pred_fallthru
        _
      // Predicated region
      $region41: #{tpu_custom_call.1} parent=31 // pred_check
        %p395 = pneg %p166
      $region42: #{tpu_custom_call.1} parent=31 // pred_check_branch
        %397 = sbr.rel (%p395) target = $region44
      $region43: #{tpu_custom_call.1} parent=31 // pred_region
        _
      $region44: #{tpu_custom_call.1} parent=31 // pred_fallthru
        _
      // Predicated region
      $region45: #{tpu_custom_call.1} parent=31 // pred_check
        %p398 = pneg %p192
      $region46: #{tpu_custom_call.1} parent=31 // pred_check_branch
        %400 = sbr.rel (%p398) target = $region48
      $region47: #{tpu_custom_call.1} parent=31 // pred_region
        _
      $region48: #{tpu_custom_call.1} parent=31 // pred_fallthru
        _
    $region32: #{tpu_custom_call.1} parent=5 // pred_fallthru
      _
    %p401 = scmp.le.s32.totalorder 2, %s13
    // Predicated region
    $region49: #{tpu_custom_call.1} parent=5 // pred_check
      %p402 = pneg %p401
    $region50: #{tpu_custom_call.1} parent=5 // pred_check_branch
      %404 = sbr.rel (%p402) target = $region52
    $region51: #{tpu_custom_call.1} parent=5 // pred_region
      %s405 = ssub.s32 %s13, 2
      // Predicated region
      $region53: #{tpu_custom_call.1} parent=51 // pred_check
        %p406 = pneg %p120
      $region54: #{tpu_custom_call.1} parent=51 // pred_check_branch
        %408 = sbr.rel (%p406) target = $region56
      $region55: #{tpu_custom_call.1} parent=51 // pred_region
        %p409 = scmp.lt.s32.totalorder %s19, 1
        %s410 = scalar_select %p409, %s19, 1
        %s411 = scalar_lea.vmem %s3, %s410
      $region56: #{tpu_custom_call.1} parent=51 // pred_fallthru
        _
      // Predicated region
      $region57: #{tpu_custom_call.1} parent=51 // pred_check
        %p412 = pneg %p146
      $region58: #{tpu_custom_call.1} parent=51 // pred_check_branch
        %414 = sbr.rel (%p412) target = $region60
      $region59: #{tpu_custom_call.1} parent=51 // pred_region
        %p415 = scmp.lt.s32.totalorder %s19, 1
        %s416 = scalar_select %p415, %s19, 1
        %s417 = scalar_lea.vmem %s4, %s416
      $region60: #{tpu_custom_call.1} parent=51 // pred_fallthru
        _
      // Predicated region
      $region61: #{tpu_custom_call.1} parent=51 // pred_check
        %p418 = pneg %p172
      $region62: #{tpu_custom_call.1} parent=51 // pred_check_branch
        %420 = sbr.rel (%p418) target = $region64
      $region63: #{tpu_custom_call.1} parent=51 // pred_region
        %p421 = scmp.lt.s32.totalorder %s19, 1
        %s422 = scalar_select %p421, %s19, 1
        %s423 = scalar_lea.vmem %s5, %s422
      $region64: #{tpu_custom_call.1} parent=51 // pred_fallthru
        _
      // Predicated region
      $region65: #{tpu_custom_call.1} parent=51 // pred_check
        %p424 = pneg %p198
      $region66: #{tpu_custom_call.1} parent=51 // pred_check_branch
        %426 = sbr.rel (%p424) target = $region68
      $region67: #{tpu_custom_call.1} parent=51 // pred_region
        %p427 = scmp.lt.s32.totalorder %s19, 1
        %s428 = scalar_select %p427, %s19, 1
        %s429 = scalar_lea.vmem %s6, %s428
      $region68: #{tpu_custom_call.1} parent=51 // pred_fallthru
        _
    $region52: #{tpu_custom_call.1} parent=5 // pred_fallthru
      _
  $region6: #{tpu_custom_call.1} parent=0 // loop_footer
    %s17 = sadd.s32 1, %s13
  $region7: #{tpu_custom_call.1} parent=0 // loop_footer_branch
    %12 = sbr.rel target = $region3
  $region8: #{tpu_custom_call.1} parent=0 // loop_exit
    _

</llo_original>
